<compile_context>
chip_gen: v7x
topology: tpu7x:2x2x1
jax: 0.10.0
libtpu: 0.0.40
codegen_flags: <defaults>
</compile_context>

<pallas_src>
import jax
import jax.numpy as jnp
from jax.experimental import pallas as pl
from jax.experimental.pallas import tpu as pltpu


def _temp_softmax_kernel(inv_t_ref, x_ref, o_ref):
    # inv_t_ref: (1,) scalar 1/temperature, scalar-prefetched into SMEM
    # x_ref:     (tm, C) logit tile in VMEM (samples on sublanes, classes on lanes)
    # o_ref:     (tm, C) tile of calibrated probabilities
    inv_t = inv_t_ref[0]
    z = x_ref[...].astype(jnp.float32) * inv_t          # VPU multiply (no divide)
    m = jnp.max(z, axis=-1, keepdims=True)              # cross-lane reduce (XLU)
    e = jnp.exp(z - m)                                   # EUP
    s = jnp.sum(e, axis=-1, keepdims=True)               # cross-lane reduce (XLU)
    o_ref[...] = (e / s).astype(o_ref.dtype)             # exact normalization


def _round_up(v, m):
    return ((v + m - 1) // m) * m


def calibrator_forward(x, temperature, *, tm=8192, out_dtype=None):
    """Temperature-scaling calibrator forward: softmax(x / T) over the class axis.

    x: [N, C] logits.  Returns [N, C] calibrated probabilities (dtype follows
    the input unless `out_dtype` is given).
    """
    N, C = x.shape
    if out_dtype is None:
        out_dtype = x.dtype

    # Sample tile: a multiple of 8 (sublane granularity), big by default to
    # amortize per-step overhead, but capped so the "parallel" grid has at
    # least 2 steps whenever there is enough work (v7x has 2 TensorCores).
    tm = max(8, (int(tm) // 8) * 8)
    if N >= 16:
        tm = min(tm, _round_up(pl.cdiv(N, 2), 8))
    else:
        tm = min(tm, _round_up(max(N, 1), 8))
    grid_m = pl.cdiv(N, tm)   # last block may be partial; Pallas clips writes

    inv_t = (jnp.float32(1.0) / jnp.asarray(temperature, jnp.float32)).reshape(1)

    return pl.pallas_call(
        _temp_softmax_kernel,
        out_shape=jax.ShapeDtypeStruct((N, C), out_dtype),
        grid_spec=pltpu.PrefetchScalarGridSpec(
            num_scalar_prefetch=1,
            grid=(grid_m,),
            in_specs=[
                # (tm, C) tile of logits; C is the full class extent.
                pl.BlockSpec((tm, C), lambda i, inv_t_ref: (i, 0)),
            ],
            out_specs=pl.BlockSpec((tm, C), lambda i, inv_t_ref: (i, 0)),
        ),
        compiler_params=pltpu.CompilerParams(
            dimension_semantics=("parallel",),
            # Double-buffered in+out at the default tm=8192, C=10, f32 is
            # ~1.3 MiB — comfortably inside every generation's scoped limit;
            # set explicitly so v5e's 16 MiB default is never the constraint.
            vmem_limit_bytes=32 * 1024 * 1024,
        ),
    )(inv_t, x)


if __name__ == "__main__":
    # Deterministic synthetic setup (mirrors torch.manual_seed(1) intent):
    # the calibrator's only parameter is the scaler temperature.
    n_class = 10
    temperature = 1.5            # deterministic in-script init
    key = jax.random.PRNGKey(0)
    k1, k2 = jax.random.split(key)

    # Case 1: small batch (two 32-row blocks).
    N1 = 64
    x1 = jax.random.normal(k1, (N1, n_class), dtype=jnp.float32) * 3.0
    q1 = jax.block_until_ready(calibrator_forward(x1, temperature))
    q1_ref = jax.nn.softmax(x1 / temperature, axis=-1)
    assert q1.shape == (N1, n_class)
    assert jnp.allclose(q1, q1_ref, atol=1e-4, rtol=1e-4)
    assert jnp.allclose(jnp.sum(q1, axis=-1), 1.0, atol=1e-4)

    # Case 2: ragged batch (exercises the partial last block + 2-step grid).
    N2 = 300
    x2 = jax.random.normal(k2, (N2, n_class), dtype=jnp.float32) * 3.0
    q2 = jax.block_until_ready(calibrator_forward(x2, temperature))
    q2_ref = jax.nn.softmax(x2 / temperature, axis=-1)
    assert q2.shape == (N2, n_class)
    assert jnp.allclose(q2, q2_ref, atol=1e-4, rtol=1e-4)
    assert jnp.allclose(jnp.sum(q2, axis=-1), 1.0, atol=1e-4)

    print("KERNEL_OK")
</pallas_src>

<mosaic_0001>
module attributes {stable_mosaic.version = 11 : i64} {
  func.func @_temp_softmax_kernel(%arg0: i32, %arg1: memref<1xf32, #tpu.memory_space<smem>>, %arg2: memref<32x10xf32, #tpu.memory_space<vmem>>, %arg3: memref<32x10xf32, #tpu.memory_space<vmem>>) attributes {dimension_semantics = [#tpu.dimension_semantics<parallel>], iteration_bounds = array<i64: 2>, scalar_prefetch = 1 : i64, scratch_operands = 0 : i64, tpu.core_type = #tpu.core_type<tc>, window_params = [{transform_indices = @transform_0, window_bounds = array<i64: 32, 10>}, {transform_indices = @transform_1, window_bounds = array<i64: 32, 10>}]} {
    %c0 = arith.constant 0 : index
    %0 = memref.load %arg1[%c0] : memref<1xf32, #tpu.memory_space<smem>>
    %c0_0 = arith.constant 0 : index
    %c0_1 = arith.constant 0 : index
    %1 = vector.load %arg2[%c0_0, %c0_1] : memref<32x10xf32, #tpu.memory_space<vmem>>, vector<32x10xf32>
    %2 = vector.broadcast %0 : f32 to vector<32x10xf32>
    %3 = arith.mulf %1, %2 : vector<32x10xf32>
    %cst = arith.constant dense<0xFF800000> : vector<32xf32>
    %4 = vector.multi_reduction <maximumf>, %3, %cst [1] : vector<32x10xf32> to vector<32xf32>
    %5 = vector.shape_cast %4 : vector<32xf32> to vector<32x1xf32>
    %6 = vector.broadcast %5 : vector<32x1xf32> to vector<32x10xf32>
    %7 = arith.subf %3, %6 : vector<32x10xf32>
    %8 = math.exp %7 : vector<32x10xf32>
    %cst_2 = arith.constant dense<0.000000e+00> : vector<32xf32>
    %9 = vector.multi_reduction <add>, %8, %cst_2 [1] : vector<32x10xf32> to vector<32xf32>
    %10 = vector.shape_cast %9 : vector<32xf32> to vector<32x1xf32>
    %11 = vector.broadcast %10 : vector<32x1xf32> to vector<32x10xf32>
    %12 = arith.divf %8, %11 : vector<32x10xf32>
    %c0_3 = arith.constant 0 : index
    %c0_4 = arith.constant 0 : index
    %13 = vector.load %arg3[%c0_3, %c0_4] : memref<32x10xf32, #tpu.memory_space<vmem>>, vector<32x10xf32>
    tpu.vector_store %arg3[%c0_3, %c0_4], %12 {strides = array<i32>} : memref<32x10xf32, #tpu.memory_space<vmem>>, vector<32x10xf32>,
    return
  }
  func.func @transform_0(%arg0: i32, %arg1: memref<1xf32, #tpu.memory_space<smem>>) -> (i32, i32) {
    %c0_i32 = arith.constant 0 : i32
    %c0_i32_0 = arith.constant 0 : i32
    return %arg0, %c0_i32 : i32, i32
  }
  func.func @transform_1(%arg0: i32, %arg1: memref<1xf32, #tpu.memory_space<smem>>) -> (i32, i32) {
    %c0_i32 = arith.constant 0 : i32
    %c0_i32_0 = arith.constant 0 : i32
    return %arg0, %c0_i32 : i32, i32
  }
}

</mosaic_0001>

<llo_original>
// kernel: tpu_custom_call.1
$region0: #{tpu_custom_call.1}
  #allocation0 [shape = 'u32[]', space=smem, size = 0x4, offset = 0x4, fixed_abs, tag = 'smem constant byte address 0x4 - core index']
  #allocation1 [shape = 'u32[144,128]{1,0:T(1,128)}', space=vmem, size = 0x12000, scoped, tag = 'internal scratch']
  #allocation2 [shape = 's32[1]{0}', space=sflag, size = 0x4, scoped, tag = 'scoped memory for tpu_custom_call.1']
  #allocation3 [shape = 'f32[1]{0:T(128)S(6)}', space=smem, size = 0x200, scoped, tag = 'prefetched SMEM operand 0']
  %s0 = inlined_call_operand.<no memory space> [shape: f32[1], index: 0, kind: input, shape index: {}]
  %s1 = inlined_call_operand.vmem [shape: f32[64,10], index: 1, kind: input, shape index: {}]
  %s2 = inlined_call_operand.vmem [shape: f32[64,10], index: 2, kind: output, shape index: {}]
  %s3 = sld [smem:[#allocation0]]
  $region37: #{tpu_custom_call.1} parent=0
    _
  %s5 = ssub.s32 1, %s3
  %s6 = scalar_select 0, %s5, %s3
  %7 = sst [smem:[#allocation3]] %s0
  loop: start=0, step=1, limit=4
  $region2: #{tpu_custom_call.1} parent=0 // loop_pre_header
    _
  $region3: #{tpu_custom_call.1} parent=0 // loop_header
    %s9 = sphi 0, %s13
    %p10 = scmp.ge.s32.totalorder %s9, 4
    %s19 = sphi 0, %s21
    %s22 = sphi 0, %s19
    %s23 = sphi 0, %s22
    %s39 = sphi 0, %s23
    %s45 = sphi 0, %s47
    %s48 = sphi 0, %s45
    %s49 = sphi 0, %s48
    %s65 = sphi 0, %s49
  $region4: #{tpu_custom_call.1} parent=0 // loop_header_branch
    %12 = sbr.rel (%p10) target = $region8
  $region5: #{tpu_custom_call.1} parent=0 // loop_body
    %s14 = ssub.s32 %s9, 1
    %s15 = ssub.s32 %s9, 2
    %s16 = sadd.s32 %s9, 1
    %s17 = ssub.s32 %s9, %s16
    %p18 = scmp.eq.s32.totalorder %s17, 0
    %s20 = sadd.s32 %s19, 1
    %s21 = scalar_select %p18, %s19, %s20
    %p24 = pneg %p18
    %p25 = scmp.eq.s32.totalorder %s9, 1
    %p26 = por %p24, %p25
    %p27 = scmp.ne.s32.totalorder %s19, %s22
    %p28 = scmp.eq.s32.totalorder %s9, 0
    %p29 = por %p27, %p28
    %p30 = scmp.ne.s32.totalorder %s19, %s22
    %p31 = scmp.eq.s32.totalorder %s14, 1
    %p32 = por %p30, %p31
    %p33 = scmp.ne.s32.totalorder %s22, %s23
    %p34 = scmp.eq.s32.totalorder %s14, 0
    %p35 = por %p33, %p34
    %p36 = scmp.ne.s32.totalorder %s22, %s23
    %p37 = scmp.eq.s32.totalorder %s15, 1
    %p38 = por %p36, %p37
    %p40 = scmp.ne.s32.totalorder %s23, %s39
    %p41 = scmp.eq.s32.totalorder %s15, 0
    %p42 = por %p40, %p41
    %s43 = ssub.s32 %s9, %s16
    %p44 = scmp.eq.s32.totalorder %s43, 0
    %s46 = sadd.s32 %s45, 1
    %s47 = scalar_select %p44, %s45, %s46
    %p50 = pneg %p44
    %p51 = scmp.eq.s32.totalorder %s9, 1
    %p52 = por %p50, %p51
    %p53 = scmp.ne.s32.totalorder %s45, %s48
    %p54 = scmp.eq.s32.totalorder %s9, 0
    %p55 = por %p53, %p54
    %p56 = scmp.ne.s32.totalorder %s45, %s48
    %p57 = scmp.eq.s32.totalorder %s14, 1
    %p58 = por %p56, %p57
    %p59 = scmp.ne.s32.totalorder %s48, %s49
    %p60 = scmp.eq.s32.totalorder %s14, 0
    %p61 = por %p59, %p60
    %p62 = scmp.ne.s32.totalorder %s48, %s49
    %p63 = scmp.eq.s32.totalorder %s15, 1
    %p64 = por %p62, %p63
    %p66 = scmp.ne.s32.totalorder %s49, %s65
    %p67 = scmp.eq.s32.totalorder %s15, 0
    %p68 = por %p66, %p67
    %p69 = scmp.le.s32.totalorder 1, %s9
    %p70 = scmp.lt.s32.totalorder %s9, 3
    %p71 = pnand %p69, %p70
    %p72 = pneg %p71
    // Predicated region
    $region9: #{tpu_custom_call.1} parent=5 // pred_check
      _
    $region10: #{tpu_custom_call.1} parent=5 // pred_check_branch
      %74 = sbr.rel (%p71) target = $region12
    $region11: #{tpu_custom_call.1} parent=5 // pred_region
      %s75 = ssub.s32 %s9, 1
    $region12: #{tpu_custom_call.1} parent=5 // pred_fallthru
      _
    %p76 = scmp.lt.s32.totalorder %s9, 2
    // Predicated region
    $region13: #{tpu_custom_call.1} parent=5 // pred_check
      %p77 = pneg %p76
    $region14: #{tpu_custom_call.1} parent=5 // pred_check_branch
      %79 = sbr.rel (%p77) target = $region16
    $region15: #{tpu_custom_call.1} parent=5 // pred_region
      // Predicated region
      $region17: #{tpu_custom_call.1} parent=15 // pred_check
        %p80 = pneg %p29
      $region18: #{tpu_custom_call.1} parent=15 // pred_check_branch
        %82 = sbr.rel (%p80) target = $region20
      $region19: #{tpu_custom_call.1} parent=15 // pred_region
        %s83 = smul.u32 4, %s9
        %p84 = scmp.lt.s32.totalorder %s83, 7
        %s85 = scalar_select %p84, %s83, 7
        %s86 = smul.addr %s85, 8
        %s87 = scalar_lea.vmem %s1, %s86
        %s88 = smul.u32 4, %s9
      $region20: #{tpu_custom_call.1} parent=15 // pred_fallthru
        _
    $region16: #{tpu_custom_call.1} parent=5 // pred_fallthru
      _
    %p89 = scmp.le.s32.totalorder 1, %s9
    %p90 = scmp.lt.s32.totalorder %s9, 3
    %p91 = pnand %p89, %p90
    %p92 = pneg %p91
    // Predicated region
    $region21: #{tpu_custom_call.1} parent=5 // pred_check
      _
    $region22: #{tpu_custom_call.1} parent=5 // pred_check_branch
      %94 = sbr.rel (%p91) target = $region24
    $region23: #{tpu_custom_call.1} parent=5 // pred_region
      %s95 = ssub.s32 %s9, 1
      %s96 = smul.u32 4, %s14
      %p97 = scmp.lt.s32.totalorder %s96, 7
      %s98 = scalar_select %p97, %s96, 7
      %s99 = smul.addr %s98, 8
      %s100 = scalar_lea.vmem %s1, %s99
      %p101 = pneg %p35
      %p102 = pneg %p32
      %p103 = pneg %p61
      %p104 = pneg %p58
      %s105 = smul.u32 4, %s14
      %p106 = scmp.lt.s32.totalorder %s105, 7
      %s107 = scalar_select %p106, %s105, 7
      %s108 = smul.addr %s107, 8
      %s109 = scalar_lea.vmem %s2, %s108
      %s110 = smul.u32 4, %s14
      %p111 = scmp.lt.s32.totalorder %s110, 7
      %s112 = scalar_select %p111, %s110, 7
      %s113 = smul.addr %s112, 8
      %s114 = scalar_lea.vmem %s1, %s113
      %s115 = smul.u32 4, %s14
      %s116 = smul.u32 4, %s14
      %p117 = scmp.lt.s32.totalorder %s116, 7
      %s118 = scalar_select %p117, %s116, 7
      %s119 = smul.addr %s118, 8
      %s120 = scalar_lea.vmem %s2, %s119
      %s121 = smul.u32 4, %s14
      %s122 = sld [smem:[#allocation3]]
      %v123 = vld [vmem:[%s114] sm:$0xff]
      %v124 = vld [vmem:[%s114 + $0x8] sm:$0xff]
      %v125 = vld [vmem:[%s114 + $0x10] sm:$0xff]
      %v126 = vld [vmem:[%s114 + $0x18] sm:$0xff]
      %v127 = vstv %s122
      %v128 = vmul.f32 %v123, %v127
      %v129 = vmul.f32 %v124, %v127
      %v130 = vmul.f32 %v125, %v127
      %v131 = vmul.f32 %v126, %v127
      %vm132 = vcmask 80896
      %v133 = vsel %vm132, %v128, -inf
      %134 = vmax.xlane.f32.xlu0 %v133
      %v135 = vpop.xlane.xlu0 %134
      %v136 = vsel %vm132, %v129, -inf
      %137 = vmax.xlane.f32.xlu0 %v136
      %v138 = vpop.xlane.xlu0 %137
      %v139 = vsel %vm132, %v130, -inf
      %140 = vmax.xlane.f32.xlu0 %v139
      %v141 = vpop.xlane.xlu0 %140
      %v142 = vsel %vm132, %v131, -inf
      %143 = vmax.xlane.f32.xlu0 %v142
      %v144 = vpop.xlane.xlu0 %143
      %v145 = vsub.f32 %v128, %v135
      %v146 = vsub.f32 %v129, %v138
      %v147 = vsub.f32 %v130, %v141
      %v148 = vsub.f32 %v131, %v144
      %v149 = vmul.f32 %v145, 1.442695
      %v150 = vpow.pop %v149
      %v151 = vmul.f32 %v146, 1.442695
      %v152 = vpow.pop %v151
      %v153 = vmul.f32 %v147, 1.442695
      %v154 = vpow.pop %v153
      %v155 = vmul.f32 %v148, 1.442695
      %v156 = vpow.pop %v155
      %v157 = vsel %vm132, %v150, 0.0
      %158 = vadd.xlane.f32.xlu0 %v157
      %v159 = vpop.xlane.xlu0 %158
      %v160 = vsel %vm132, %v152, 0.0
      %161 = vadd.xlane.f32.xlu0 %v160
      %v162 = vpop.xlane.xlu0 %161
      %v163 = vsel %vm132, %v154, 0.0
      %164 = vadd.xlane.f32.xlu0 %v163
      %v165 = vpop.xlane.xlu0 %164
      %v166 = vsel %vm132, %v156, 0.0
      %167 = vadd.xlane.f32.xlu0 %v166
      %v168 = vpop.xlane.xlu0 %167
      %v169 = vrcp.pop %v159
      %v170 = vmul.f32 %v150, %v169
      %v171 = vrcp.pop %v162
      %v172 = vmul.f32 %v152, %v171
      %v173 = vrcp.pop %v165
      %v174 = vmul.f32 %v154, %v173
      %v175 = vrcp.pop %v168
      %v176 = vmul.f32 %v156, %v175
      %177 = vst.msk [vmem:[%s120] sm:$0xff] %vm132, %v170
      %178 = vst.msk [vmem:[%s120 + $0x8] sm:$0xff] %vm132, %v172
      %179 = vst.msk [vmem:[%s120 + $0x10] sm:$0xff] %vm132, %v174
      %180 = vst.msk [vmem:[%s120 + $0x18] sm:$0xff] %vm132, %v176
      %s181 = smul.u32 4, %s14
      %p182 = scmp.lt.s32.totalorder %s181, 7
      %s183 = scalar_select %p182, %s181, 7
      %s184 = smul.addr %s183, 8
      %s185 = scalar_lea.vmem %s2, %s184
      // Predicated region
      $region25: #{tpu_custom_call.1} parent=23 // pred_check
        %p186 = pneg %p58
      $region26: #{tpu_custom_call.1} parent=23 // pred_check_branch
        %188 = sbr.rel (%p186) target = $region28
      $region27: #{tpu_custom_call.1} parent=23 // pred_region
        %s189 = smul.u32 4, %s14
      $region28: #{tpu_custom_call.1} parent=23 // pred_fallthru
        _
    $region24: #{tpu_custom_call.1} parent=5 // pred_fallthru
      _
    %p190 = scmp.le.s32.totalorder 2, %s9
    // Predicated region
    $region29: #{tpu_custom_call.1} parent=5 // pred_check
      %p191 = pneg %p190
    $region30: #{tpu_custom_call.1} parent=5 // pred_check_branch
      %193 = sbr.rel (%p191) target = $region32
    $region31: #{tpu_custom_call.1} parent=5 // pred_region
      %s194 = ssub.s32 %s9, 2
      // Predicated region
      $region33: #{tpu_custom_call.1} parent=31 // pred_check
        %p195 = pneg %p64
      $region34: #{tpu_custom_call.1} parent=31 // pred_check_branch
        %197 = sbr.rel (%p195) target = $region36
      $region35: #{tpu_custom_call.1} parent=31 // pred_region
        %s198 = smul.u32 4, %s15
        %p199 = scmp.lt.s32.totalorder %s198, 7
        %s200 = scalar_select %p199, %s198, 7
        %s201 = smul.addr %s200, 8
        %s202 = scalar_lea.vmem %s2, %s201
      $region36: #{tpu_custom_call.1} parent=31 // pred_fallthru
        _
    $region32: #{tpu_custom_call.1} parent=5 // pred_fallthru
      _
  $region6: #{tpu_custom_call.1} parent=0 // loop_footer
    %s13 = sadd.s32 1, %s9
  $region7: #{tpu_custom_call.1} parent=0 // loop_footer_branch
    %8 = sbr.rel target = $region3
  $region8: #{tpu_custom_call.1} parent=0 // loop_exit
    _

</llo_original>
